<compile_context>
chip_gen: v5e
topology: v5e:2x2
jax: 0.10.0
libtpu: 0.0.40
codegen_flags: <defaults>
</compile_context>

<pallas_src>
import jax
import jax.numpy as jnp
from jax.experimental import pallas as pl
from jax.experimental.pallas import tpu as pltpu


LANE = 128     # output/contraction feature dims of the hidden layers padded to this
SUBLANE = 8    # f32/batch sublane granularity


def _round_up(n, m):
    return (n + m - 1) // m * m


# ----------------------------- Pallas kernel ------------------------------- #
def tower_mlp_kernel(x_ref, w1_ref, b1_ref, w2_ref, b2_ref, o_ref):
    """Fused two-layer MLP tile: ReLU(ReLU(x @ W1 + b1) @ W2 + b2).

    x / W1 / W2 / intermediate are bf16 (MXU-native); accumulation, bias-add and
    ReLU run in f32 (v5e has no bf16 VPU path).  Dropout(p=0.0) is an identity
    and is omitted.  The bf16 intermediate deviates slightly from the f32
    PyTorch reference; acceptable for ranking scores.
    """
    h = jnp.dot(x_ref[...], w1_ref[...], preferred_element_type=jnp.float32)
    h = jnp.maximum(h + b1_ref[...], 0.0).astype(jnp.bfloat16)
    o = jnp.dot(h, w2_ref[...], preferred_element_type=jnp.float32)
    o_ref[...] = jnp.maximum(o + b2_ref[...], 0.0).astype(o_ref.dtype)


def tower_mlp(x, w1_t, b1, w2_t, b2, *, block_b=2048):
    """x: bf16 [B, D] (D unpadded); w1_t: bf16 [D, H1]; b1: f32 [1, H1];
       w2_t: bf16 [H1, H2]; b2: f32 [1, H2].  H1, H2 are multiples of 128.
       Returns bf16 [B, H2]."""
    B, D = x.shape
    H1 = w1_t.shape[1]
    H2 = w2_t.shape[1]

    # ---- batch tile selection: no HBM pad of x, ragged last tile is fine ----
    tb = min(block_b, B)
    if tb < B:
        tb = _round_up(tb, SUBLANE)      # block sublane dim must be a multiple of 8
    # v7x megacore: guarantee >= 2 grid steps so the "parallel" batch axis really
    # splits across both TensorCores (harmless no-op on v5e / v6e).
    if pl.cdiv(B, tb) < 2 and B >= 2 * SUBLANE:
        tb = _round_up(pl.cdiv(B, 2), SUBLANE)
    grid = (pl.cdiv(B, tb),)

    # ---- explicit scoped-VMEM budget (v5e default is only 16 MiB) ----
    vmem_bytes = (
        2 * tb * D * 2                         # x tiles (bf16, double-buffered)
        + 2 * tb * H2 * 2                      # out tiles (bf16, double-buffered)
        + 2 * (D * H1 + H1 * H2) * 2           # weights (bf16, default double-buffered)
        + 2 * SUBLANE * (H1 + H2) * 4          # biases (f32, sublane-padded)
        + tb * H1 * (4 + 2)                    # f32 intermediate + bf16 copy
    )
    vmem_limit = min(max(vmem_bytes * 3 // 2 + (1 << 20), 32 << 20), 64 << 20)

    flops = 2 * B * (D * H1 + H1 * H2)
    bytes_accessed = (B * D * 2                       # x (bf16)
                      + (D * H1 + H1 * H2) * 2        # weights (bf16)
                      + (H1 + H2) * 4                 # biases (f32)
                      + B * H2 * 2)                   # output (bf16)

    return pl.pallas_call(
        tower_mlp_kernel,
        out_shape=jax.ShapeDtypeStruct((B, H2), jnp.bfloat16),
        grid_spec=pltpu.PrefetchScalarGridSpec(
            num_scalar_prefetch=0,
            grid=grid,
            in_specs=[
                # x: streamed per batch tile (last dim = full D -> no K padding pass)
                pl.BlockSpec((tb, D), lambda i: (i, 0)),
                # Weights / biases: constant index_map -> fetched once, VMEM-resident
                # across grid steps.  At production widths (Dp/H1 in the thousands)
                # these should additionally be single-buffered to halve resident VMEM.
                pl.BlockSpec((D, H1), lambda i: (0, 0)),
                pl.BlockSpec((1, H1), lambda i: (0, 0)),
                pl.BlockSpec((H1, H2), lambda i: (0, 0)),
                pl.BlockSpec((1, H2), lambda i: (0, 0)),
            ],
            out_specs=pl.BlockSpec((tb, H2), lambda i: (i, 0)),
        ),
        compiler_params=pltpu.CompilerParams(
            dimension_semantics=("parallel",),      # batch rows are independent
            vmem_limit_bytes=int(vmem_limit),
        ),
        cost_estimate=pl.CostEstimate(
            flops=flops, transcendentals=0, bytes_accessed=bytes_accessed),
    )(x, w1_t, b1, w2_t, b2)


# --------------------------- Embedding "module" ---------------------------- #
def embedding_forward(sparse_ids, dense_feats, emb_tables_bf16):
    """Synthetic EmbeddingModule: per-sparse-feature table lookup, concat with dense.

    Emits bf16 directly so the MLP kernel consumes it with no extra pad/cast pass.
    sparse_ids:  int32 [B, n_sparse]
    dense_feats: f32   [B, dense_dim]
    emb_tables_bf16: list of bf16 [vocab_i, emb_dim]
    returns bf16 [B, n_sparse*emb_dim + dense_dim]
    """
    # TODO(synk): use_senet (SE re-weighting of field embeddings) not implemented.
    # TODO(synk): the gather+concat still materializes dnn_input in HBM once; fusing
    # it into the MLP kernel (scalar-prefetch ids in SMEM + per-row DMA from the HBM
    # tables into the x VMEM tile) would remove that pass entirely.
    looked_up = [tbl[sparse_ids[:, i]] for i, tbl in enumerate(emb_tables_bf16)]
    return jnp.concatenate(looked_up + [dense_feats.astype(jnp.bfloat16)], axis=-1)


# ------------------------------- Tower model -------------------------------- #
def make_tower_params(key, input_dims, dnn_size):
    """Deterministic parameter init (PyTorch Linear shapes: W [out, in], b [out])."""
    params = []
    in_dim = input_dims
    for out_dim in dnn_size:
        kw, kb, key = jax.random.split(key, 3)
        bound = 1.0 / jnp.sqrt(in_dim)
        w = jax.random.uniform(kw, (out_dim, in_dim), jnp.float32, -bound, bound)
        b = jax.random.uniform(kb, (out_dim,), jnp.float32, -bound, bound)
        params.append((w, b))
        in_dim = out_dim
    return params


def prepare_tower_params(dnn_params, input_dims):
    """One-time conversion: PyTorch [out, in] f32 -> transposed, bf16, output dims
    padded to multiples of 128 (lane-dense stores / contractions).  The FIRST layer's
    contraction dim is kept at the natural feature width so the activation tensor
    needs no padding pass.  Zero padding keeps the math exact: padded layer outputs
    are ReLU(0+0)=0 and feed zero rows of the next layer.  Hoisted out of the
    per-call path."""
    prepared = []
    in_p = input_dims
    for w, b in dnn_params:
        out_dim, in_dim = w.shape
        out_p = _round_up(out_dim, LANE)
        w_t = jnp.zeros((in_p, out_p), jnp.float32).at[:in_dim, :out_dim].set(w.T)
        b_p = jnp.zeros((1, out_p), jnp.float32).at[:, :out_dim].set(b)
        prepared.append((w_t.astype(jnp.bfloat16), b_p))
        in_p = out_p
    return prepared


def tower_forward(sparse_ids, dense_feats, emb_tables_bf16, prepared_params, out_dim,
                  *, block_b=2048):
    # Kernel is specialized to len(dnn_size) == 2 (the module default), fully fused.
    x = embedding_forward(sparse_ids, dense_feats, emb_tables_bf16)   # bf16 [B, D]
    (w1_t, b1), (w2_t, b2) = prepared_params
    out = tower_mlp(x, w1_t, b1, w2_t, b2, block_b=block_b)
    return out[:, :out_dim]      # no-op when out_dim is already a multiple of 128


# --------------------------------- main ------------------------------------ #
if __name__ == "__main__":
    key = jax.random.PRNGKey(0)

    # Synthetic datatypes: 2 sparse features (vocab 100, 50) with emb_dim 16 each,
    # plus an 8-dim dense block -> input_dims = 2*16 + 8 = 40 (used unpadded).
    B = 64
    n_sparse = 2
    vocabs = (100, 50)
    emb_dim = 16
    dense_dim = 8
    dnn_size = (256, 128)       # module default; multiples of 128 (lane-dense)
    input_dims = n_sparse * emb_dim + dense_dim

    k_ids, k_dense, k_emb0, k_emb1, k_dnn = jax.random.split(key, 5)

    sparse_ids = jnp.stack(
        [jax.random.randint(jax.random.fold_in(k_ids, i), (B,), 0, vocabs[i])
         for i in range(n_sparse)], axis=1).astype(jnp.int32)
    dense_feats = jax.random.normal(k_dense, (B, dense_dim), jnp.float32)

    emb_tables = [
        jax.random.normal(k_emb0, (vocabs[0], emb_dim), jnp.float32) * 0.05,
        jax.random.normal(k_emb1, (vocabs[1], emb_dim), jnp.float32) * 0.05,
    ]
    dnn_params = make_tower_params(k_dnn, input_dims, dnn_size)

    # One-time parameter prep (transpose + pad + bf16 cast), hoisted out of the call.
    emb_tables_bf16 = [t.astype(jnp.bfloat16) for t in emb_tables]
    prepared_params = prepare_tower_params(dnn_params, input_dims)

    fwd = jax.jit(
        lambda ids, dense: tower_forward(
            ids, dense, emb_tables_bf16, prepared_params, dnn_size[-1]))

    out = jax.block_until_ready(fwd(sparse_ids, dense_feats))
    # At B=64 the tile logic picks tb=32 -> grid=(2,), so both v7x cores get work.

    # Reference check in plain JAX / f32 (bf16 matmul inputs & bf16 output ->
    # loosened tolerance).
    x0 = jnp.concatenate(
        [emb_tables[i][sparse_ids[:, i]] for i in range(n_sparse)] + [dense_feats],
        axis=-1)
    (w1, b1), (w2, b2) = dnn_params
    ref = jnp.maximum(jnp.maximum(x0 @ w1.T + b1, 0.0) @ w2.T + b2, 0.0)
    assert out.shape == (B, dnn_size[-1]) and out.dtype == jnp.bfloat16
    out_f32 = out.astype(jnp.float32)
    assert jnp.allclose(out_f32, ref, atol=3e-2, rtol=3e-2), (
        float(jnp.max(jnp.abs(out_f32 - ref))))

    print("KERNEL_OK")
</pallas_src>

<mosaic_0001>
module attributes {stable_mosaic.version = 11 : i64} {
  func.func @tower_mlp_kernel(%arg0: i32, %arg1: memref<32x40xbf16, #tpu.memory_space<vmem>>, %arg2: memref<40x256xbf16, #tpu.memory_space<vmem>>, %arg3: memref<1x256xf32, #tpu.memory_space<vmem>>, %arg4: memref<256x128xbf16, #tpu.memory_space<vmem>>, %arg5: memref<1x128xf32, #tpu.memory_space<vmem>>, %arg6: memref<32x128xbf16, #tpu.memory_space<vmem>>) attributes {dimension_semantics = [#tpu.dimension_semantics<parallel>], iteration_bounds = array<i64: 2>, scalar_prefetch = 0 : i64, scratch_operands = 0 : i64, tpu.core_type = #tpu.core_type<tc>, window_params = [{transform_indices = @transform_0, window_bounds = array<i64: 32, 40>}, {pipeline_mode = #tpu.pipeline_mode<synchronous>, transform_indices = @transform_1, window_bounds = array<i64: 40, 256>}, {pipeline_mode = #tpu.pipeline_mode<synchronous>, transform_indices = @transform_2, window_bounds = array<i64: 1, 256>}, {pipeline_mode = #tpu.pipeline_mode<synchronous>, transform_indices = @transform_3, window_bounds = array<i64: 256, 128>}, {pipeline_mode = #tpu.pipeline_mode<synchronous>, transform_indices = @transform_4, window_bounds = array<i64: 1, 128>}, {transform_indices = @transform_5, window_bounds = array<i64: 32, 128>}]} {
    %c0 = arith.constant 0 : index
    %c0_0 = arith.constant 0 : index
    %0 = vector.load %arg1[%c0, %c0_0] : memref<32x40xbf16, #tpu.memory_space<vmem>>, vector<32x40xbf16>
    %c0_1 = arith.constant 0 : index
    %c0_2 = arith.constant 0 : index
    %1 = vector.load %arg2[%c0_1, %c0_2] : memref<40x256xbf16, #tpu.memory_space<vmem>>, vector<40x256xbf16>
    %cst = arith.constant dense<0.000000e+00> : vector<32x256xf32>
    %2 = tpu.matmul %0, %1, %cst {dimension_numbers = #tpu.dot_dimension_numbers<[1], [0], [0], [1], [0, 0, 1, 1], [], []>} : vector<32x40xbf16>, vector<40x256xbf16>, vector<32x256xf32> -> vector<32x256xf32>
    %c0_3 = arith.constant 0 : index
    %c0_4 = arith.constant 0 : index
    %3 = vector.load %arg3[%c0_3, %c0_4] : memref<1x256xf32, #tpu.memory_space<vmem>>, vector<1x256xf32>
    %4 = vector.broadcast %3 : vector<1x256xf32> to vector<32x256xf32>
    %5 = arith.addf %2, %4 : vector<32x256xf32>
    %cst_5 = arith.constant 0.000000e+00 : f32
    %6 = vector.broadcast %cst_5 : f32 to vector<32x256xf32>
    %7 = arith.maximumf %5, %6 : vector<32x256xf32>
    %8 = arith.truncf %7 : vector<32x256xf32> to vector<32x256xbf16>
    %c0_6 = arith.constant 0 : index
    %c0_7 = arith.constant 0 : index
    %9 = vector.load %arg4[%c0_6, %c0_7] : memref<256x128xbf16, #tpu.memory_space<vmem>>, vector<256x128xbf16>
    %cst_8 = arith.constant dense<0.000000e+00> : vector<32x128xf32>
    %10 = tpu.matmul %8, %9, %cst_8 {dimension_numbers = #tpu.dot_dimension_numbers<[1], [0], [0], [1], [0, 0, 1, 1], [], []>} : vector<32x256xbf16>, vector<256x128xbf16>, vector<32x128xf32> -> vector<32x128xf32>
    %c0_9 = arith.constant 0 : index
    %c0_10 = arith.constant 0 : index
    %11 = vector.load %arg5[%c0_9, %c0_10] : memref<1x128xf32, #tpu.memory_space<vmem>>, vector<1x128xf32>
    %12 = vector.broadcast %11 : vector<1x128xf32> to vector<32x128xf32>
    %13 = arith.addf %10, %12 : vector<32x128xf32>
    %cst_11 = arith.constant 0.000000e+00 : f32
    %14 = vector.broadcast %cst_11 : f32 to vector<32x128xf32>
    %15 = arith.maximumf %13, %14 : vector<32x128xf32>
    %16 = arith.truncf %15 : vector<32x128xf32> to vector<32x128xbf16>
    %c0_12 = arith.constant 0 : index
    %c0_13 = arith.constant 0 : index
    %17 = vector.load %arg6[%c0_12, %c0_13] : memref<32x128xbf16, #tpu.memory_space<vmem>>, vector<32x128xbf16>
    tpu.vector_store %arg6[%c0_12, %c0_13], %16 {strides = array<i32>} : memref<32x128xbf16, #tpu.memory_space<vmem>>, vector<32x128xbf16>,
    return
  }
  func.func @transform_0(%arg0: i32) -> (i32, i32) {
    %c0_i32 = arith.constant 0 : i32
    %c0_i32_0 = arith.constant 0 : i32
    return %arg0, %c0_i32 : i32, i32
  }
  func.func @transform_1(%arg0: i32) -> (i32, i32) {
    %c0_i32 = arith.constant 0 : i32
    %c0_i32_0 = arith.constant 0 : i32
    %c0_i32_1 = arith.constant 0 : i32
    return %c0_i32, %c0_i32_0 : i32, i32
  }
  func.func @transform_2(%arg0: i32) -> (i32, i32) {
    %c0_i32 = arith.constant 0 : i32
    %c0_i32_0 = arith.constant 0 : i32
    %c0_i32_1 = arith.constant 0 : i32
    return %c0_i32, %c0_i32_0 : i32, i32
  }
  func.func @transform_3(%arg0: i32) -> (i32, i32) {
    %c0_i32 = arith.constant 0 : i32
    %c0_i32_0 = arith.constant 0 : i32
    %c0_i32_1 = arith.constant 0 : i32
    return %c0_i32, %c0_i32_0 : i32, i32
  }
  func.func @transform_4(%arg0: i32) -> (i32, i32) {
    %c0_i32 = arith.constant 0 : i32
    %c0_i32_0 = arith.constant 0 : i32
    %c0_i32_1 = arith.constant 0 : i32
    return %c0_i32, %c0_i32_0 : i32, i32
  }
  func.func @transform_5(%arg0: i32) -> (i32, i32) {
    %c0_i32 = arith.constant 0 : i32
    %c0_i32_0 = arith.constant 0 : i32
    return %arg0, %c0_i32 : i32, i32
  }
}

</mosaic_0001>

<llo_original>
// kernel: _lambda_.1
$region0: #{_lambda_.1}
  #allocation0 [shape = 'u32[]', space=smem, size = 0x4, offset = 0x4, fixed_abs, tag = 'smem constant byte address 0x4 - core index']
  #allocation1 [shape = 'u32[72,128]{1,0:T(1,128)}', space=vmem, size = 0x9000, scoped, tag = 'internal scratch']
  %s0 = inlined_call_operand.vmem [shape: bf16[64,40], index: 0, kind: input, shape index: {}]
  %s1 = inlined_call_operand.vmem [shape: bf16[40,256], index: 1, kind: input, shape index: {}]
  %s2 = inlined_call_operand.vmem [shape: f32[1,256], index: 2, kind: input, shape index: {}]
  %s3 = inlined_call_operand.vmem [shape: bf16[256,128], index: 3, kind: input, shape index: {}]
  %s4 = inlined_call_operand.vmem [shape: f32[1,128], index: 4, kind: input, shape index: {}]
  %s5 = inlined_call_operand.hbm [shape: bf16[64,128], index: 5, kind: output, shape index: {}]
  %s6 = sld [smem:[#allocation0]]
  $region53: #{_lambda_.1} parent=0
    _
  %s8 = ssub.s32 1, %s6
  %s9 = scalar_select 0, %s8, %s6
  $region1: #{_lambda_.1} parent=0
    #allocation2 [shape = 'u8[16384]{0}', space=vmem, size = 0x4000, scoped, tag = 'output window, operand 0']
    #allocation3 [shape = 's32[2]{0}', space=sflag, size = 0x8, scoped, tag = 'scoped memory for _lambda_.1']
    %10 = vsyncpa [#allocation3], 0
    %s11 = scalar_lea.sflag [#allocation3], 1
    %12 = vsyncpa %s11, 0
    loop: start=0, step=1, limit=4
    $region2: #{_lambda_.1} parent=1 // loop_pre_header
      _
    $region3: #{_lambda_.1} parent=1 // loop_header
      %s14 = sphi 0, %s18
      %p15 = scmp.ge.s32.totalorder %s14, 4
      %s24 = sphi 0, %s26
      %s27 = sphi 0, %s24
      %s28 = sphi 0, %s27
      %s44 = sphi 0, %s28
      %s48 = sphi 0, %s48
      %s50 = sphi 0, %s48
      %s51 = sphi 0, %s50
      %s65 = sphi 0, %s51
      %s69 = sphi 0, %s69
      %s71 = sphi 0, %s69
      %s72 = sphi 0, %s71
      %s86 = sphi 0, %s72
      %s90 = sphi 0, %s90
      %s92 = sphi 0, %s90
      %s93 = sphi 0, %s92
      %s107 = sphi 0, %s93
      %s111 = sphi 0, %s111
      %s113 = sphi 0, %s111
      %s114 = sphi 0, %s113
      %s128 = sphi 0, %s114
      %s134 = sphi 0, %s136
      %s137 = sphi 0, %s134
      %s138 = sphi 0, %s137
      %s154 = sphi 0, %s138
    $region4: #{_lambda_.1} parent=1 // loop_header_branch
      %17 = sbr.rel (%p15) target = $region8
    $region5: #{_lambda_.1} parent=1 // loop_body
      %s19 = ssub.s32 %s14, 1
      %s20 = ssub.s32 %s14, 2
      %s21 = sadd.s32 %s14, 1
      %s22 = ssub.s32 %s14, %s21
      %p23 = scmp.eq.s32.totalorder %s22, 0
      %s25 = sadd.s32 %s24, 1
      %s26 = scalar_select %p23, %s24, %s25
      %p29 = pneg %p23
      %p30 = scmp.eq.s32.totalorder %s14, 1
      %p31 = por %p29, %p30
      %p32 = scmp.ne.s32.totalorder %s24, %s27
      %p33 = scmp.eq.s32.totalorder %s14, 0
      %p34 = por %p32, %p33
      %p35 = scmp.ne.s32.totalorder %s24, %s27
      %p36 = scmp.eq.s32.totalorder %s19, 1
      %p37 = por %p35, %p36
      %p38 = scmp.ne.s32.totalorder %s27, %s28
      %p39 = scmp.eq.s32.totalorder %s19, 0
      %p40 = por %p38, %p39
      %p41 = scmp.ne.s32.totalorder %s27, %s28
      %p42 = scmp.eq.s32.totalorder %s20, 1
      %p43 = por %p41, %p42
      %p45 = scmp.ne.s32.totalorder %s28, %s44
      %p46 = scmp.eq.s32.totalorder %s20, 0
      %p47 = por %p45, %p46
      %s49 = sadd.s32 %s48, 1
      %p52 = scmp.eq.s32.totalorder %s14, 1
      %p53 = scmp.ne.s32.totalorder %s48, %s50
      %p54 = scmp.eq.s32.totalorder %s14, 0
      %p55 = por %p53, %p54
      %p56 = scmp.ne.s32.totalorder %s48, %s50
      %p57 = scmp.eq.s32.totalorder %s19, 1
      %p58 = por %p56, %p57
      %p59 = scmp.ne.s32.totalorder %s50, %s51
      %p60 = scmp.eq.s32.totalorder %s19, 0
      %p61 = por %p59, %p60
      %p62 = scmp.ne.s32.totalorder %s50, %s51
      %p63 = scmp.eq.s32.totalorder %s20, 1
      %p64 = por %p62, %p63
      %p66 = scmp.ne.s32.totalorder %s51, %s65
      %p67 = scmp.eq.s32.totalorder %s20, 0
      %p68 = por %p66, %p67
      %s70 = sadd.s32 %s69, 1
      %p73 = scmp.eq.s32.totalorder %s14, 1
      %p74 = scmp.ne.s32.totalorder %s69, %s71
      %p75 = scmp.eq.s32.totalorder %s14, 0
      %p76 = por %p74, %p75
      %p77 = scmp.ne.s32.totalorder %s69, %s71
      %p78 = scmp.eq.s32.totalorder %s19, 1
      %p79 = por %p77, %p78
      %p80 = scmp.ne.s32.totalorder %s71, %s72
      %p81 = scmp.eq.s32.totalorder %s19, 0
      %p82 = por %p80, %p81
      %p83 = scmp.ne.s32.totalorder %s71, %s72
      %p84 = scmp.eq.s32.totalorder %s20, 1
      %p85 = por %p83, %p84
      %p87 = scmp.ne.s32.totalorder %s72, %s86
      %p88 = scmp.eq.s32.totalorder %s20, 0
      %p89 = por %p87, %p88
      %s91 = sadd.s32 %s90, 1
      %p94 = scmp.eq.s32.totalorder %s14, 1
      %p95 = scmp.ne.s32.totalorder %s90, %s92
      %p96 = scmp.eq.s32.totalorder %s14, 0
      %p97 = por %p95, %p96
      %p98 = scmp.ne.s32.totalorder %s90, %s92
      %p99 = scmp.eq.s32.totalorder %s19, 1
      %p100 = por %p98, %p99
      %p101 = scmp.ne.s32.totalorder %s92, %s93
      %p102 = scmp.eq.s32.totalorder %s19, 0
      %p103 = por %p101, %p102
      %p104 = scmp.ne.s32.totalorder %s92, %s93
      %p105 = scmp.eq.s32.totalorder %s20, 1
      %p106 = por %p104, %p105
      %p108 = scmp.ne.s32.totalorder %s93, %s107
      %p109 = scmp.eq.s32.totalorder %s20, 0
      %p110 = por %p108, %p109
      %s112 = sadd.s32 %s111, 1
      %p115 = scmp.eq.s32.totalorder %s14, 1
      %p116 = scmp.ne.s32.totalorder %s111, %s113
      %p117 = scmp.eq.s32.totalorder %s14, 0
      %p118 = por %p116, %p117
      %p119 = scmp.ne.s32.totalorder %s111, %s113
      %p120 = scmp.eq.s32.totalorder %s19, 1
      %p121 = por %p119, %p120
      %p122 = scmp.ne.s32.totalorder %s113, %s114
      %p123 = scmp.eq.s32.totalorder %s19, 0
      %p124 = por %p122, %p123
      %p125 = scmp.ne.s32.totalorder %s113, %s114
      %p126 = scmp.eq.s32.totalorder %s20, 1
      %p127 = por %p125, %p126
      %p129 = scmp.ne.s32.totalorder %s114, %s128
      %p130 = scmp.eq.s32.totalorder %s20, 0
      %p131 = por %p129, %p130
      %s132 = ssub.s32 %s14, %s21
      %p133 = scmp.eq.s32.totalorder %s132, 0
      %s135 = sadd.s32 %s134, 1
      %s136 = scalar_select %p133, %s134, %s135
      %p139 = pneg %p133
      %p140 = scmp.eq.s32.totalorder %s14, 1
      %p141 = por %p139, %p140
      %p142 = scmp.ne.s32.totalorder %s134, %s137
      %p143 = scmp.eq.s32.totalorder %s14, 0
      %p144 = por %p142, %p143
      %p145 = scmp.ne.s32.totalorder %s134, %s137
      %p146 = scmp.eq.s32.totalorder %s19, 1
      %p147 = por %p145, %p146
      %p148 = scmp.ne.s32.totalorder %s137, %s138
      %p149 = scmp.eq.s32.totalorder %s19, 0
      %p150 = por %p148, %p149
      %p151 = scmp.ne.s32.totalorder %s137, %s138
      %p152 = scmp.eq.s32.totalorder %s20, 1
      %p153 = por %p151, %p152
      %p155 = scmp.ne.s32.totalorder %s138, %s154
      %p156 = scmp.eq.s32.totalorder %s20, 0
      %p157 = por %p155, %p156
      %p158 = scmp.le.s32.totalorder 1, %s14
      %p159 = scmp.lt.s32.totalorder %s14, 3
      %p160 = pnand %p158, %p159
      %p161 = pneg %p160
      // Predicated region
      $region9: #{_lambda_.1} parent=5 // pred_check
        _
      $region10: #{_lambda_.1} parent=5 // pred_check_branch
        %163 = sbr.rel (%p160) target = $region12
      $region11: #{_lambda_.1} parent=5 // pred_region
        %s164 = ssub.s32 %s14, 1
        // Predicated region
        $region13: #{_lambda_.1} parent=11 // pred_check
          %p165 = pneg %p61
        $region14: #{_lambda_.1} parent=11 // pred_check_branch
          %167 = sbr.rel (%p165) target = $region16
        $region15: #{_lambda_.1} parent=11 // pred_region
          _
        $region16: #{_lambda_.1} parent=11 // pred_fallthru
          _
        // Predicated region
        $region17: #{_lambda_.1} parent=11 // pred_check
          %p168 = pneg %p82
        $region18: #{_lambda_.1} parent=11 // pred_check_branch
          %170 = sbr.rel (%p168) target = $region20
        $region19: #{_lambda_.1} parent=11 // pred_region
          _
        $region20: #{_lambda_.1} parent=11 // pred_fallthru
          _
        // Predicated region
        $region21: #{_lambda_.1} parent=11 // pred_check
          %p171 = pneg %p103
        $region22: #{_lambda_.1} parent=11 // pred_check_branch
          %173 = sbr.rel (%p171) target = $region24
        $region23: #{_lambda_.1} parent=11 // pred_region
          _
        $region24: #{_lambda_.1} parent=11 // pred_fallthru
          _
        // Predicated region
        $region25: #{_lambda_.1} parent=11 // pred_check
          %p174 = pneg %p124
        $region26: #{_lambda_.1} parent=11 // pred_check_branch
          %176 = sbr.rel (%p174) target = $region28
        $region27: #{_lambda_.1} parent=11 // pred_region
          _
        $region28: #{_lambda_.1} parent=11 // pred_fallthru
          _
      $region12: #{_lambda_.1} parent=5 // pred_fallthru
        _
      %p177 = scmp.lt.s32.totalorder %s14, 2
      // Predicated region
      $region29: #{_lambda_.1} parent=5 // pred_check
        %p178 = pneg %p177
      $region30: #{_lambda_.1} parent=5 // pred_check_branch
        %180 = sbr.rel (%p178) target = $region32
      $region31: #{_lambda_.1} parent=5 // pred_region
        // Predicated region
        $region33: #{_lambda_.1} parent=31 // pred_check
          %p181 = pneg %p34
        $region34: #{_lambda_.1} parent=31 // pred_check_branch
          %183 = sbr.rel (%p181) target = $region36
        $region35: #{_lambda_.1} parent=31 // pred_region
          %s184 = smul.u32 4, %s14
          %p185 = scmp.lt.s32.totalorder %s184, 7
          %s186 = scalar_select %p185, %s184, 7
          %s187 = smul.addr %s186, 4
          %s188 = scalar_lea.vmem %s0, %s187
          %s189 = smul.u32 4, %s14
        $region36: #{_lambda_.1} parent=31 // pred_fallthru
          _
      $region32: #{_lambda_.1} parent=5 // pred_fallthru
        _
      %p190 = scmp.le.s32.totalorder 1, %s14
      %p191 = scmp.lt.s32.totalorder %s14, 3
      %p192 = pnand %p190, %p191
      %p193 = pneg %p192
      // Predicated region
      $region37: #{_lambda_.1} parent=5 // pred_check
        _
      $region38: #{_lambda_.1} parent=5 // pred_check_branch
        %195 = sbr.rel (%p192) target = $region40
      $region39: #{_lambda_.1} parent=5 // pred_region
        %s196 = ssub.s32 %s14, 1
        %s197 = smul.u32 4, %s19
        %p198 = scmp.lt.s32.totalorder %s197, 7
        %s199 = scalar_select %p198, %s197, 7
        %s200 = smul.addr %s199, 4
        %s201 = scalar_lea.vmem %s0, %s200
        %p202 = pneg %p40
        %p203 = pneg %p37
        %p204 = pneg %p61
        %p205 = pneg %p58
        %p206 = pneg %p82
        %p207 = pneg %p79
        %p208 = pneg %p103
        %p209 = pneg %p100
        %p210 = pneg %p124
        %p211 = pneg %p121
        %p212 = pneg %p150
        %p213 = pneg %p147
        %s214 = sand.u32 %s137, 1
        %s215 = scalar_lea.sflag [#allocation3], %s214
        %s216 = sand.u32 %s137, 1
        %s217 = smul.addr %s216, 16
        %s218 = scalar_lea.vmem [#allocation2], %s217
        %s219 = smul.u32 4, %s19
        %p220 = scmp.lt.s32.totalorder %s219, 7
        %s221 = scalar_select %p220, %s219, 7
        %s222 = smul.addr %s221, 4
        %s223 = scalar_lea.vmem %s0, %s222
        %s224 = smul.u32 4, %s19
        %s225 = smul.u32 4, %s19
        %v227 = vld [vmem:[%s223] sm:$0xf]
        %v228 = vld [vmem:[%s223 + $0x4] sm:$0xf]
        %v229 = vld [vmem:[%s223 + $0x8] sm:$0xf]
        %v230 = vld [vmem:[%s223 + $0xc] sm:$0xf]
        %v231 = vld [vmem:[%s1] sm:$0xff]
        %v232 = vld [vmem:[%s1 + $0x8] sm:$0xff]
        %v233 = vld [vmem:[%s1 + $0x10] sm:$0xff]
        %v234 = vld [vmem:[%s1 + $0x18] sm:$0xff]
        %v235 = vld [vmem:[%s1 + $0x20] sm:$0xff]
        %v236 = vld [vmem:[%s2] sm:$0x3]
        %v238 = vperm.slane %v236, 0
        %v239 = vperm.slane %v236, 1
        %v246 = vunpack.c.l.b16 %v227
        %v247 = vunpack.c.l.b16 %v228
        %v248 = vunpack.c.l.b16 %v229
        %v249 = vunpack.c.l.b16 %v230
        %v250 = vpack.c.b16 %v247, %v246
        %v251 = vpack.c.b16 %v249, %v248
        %v257 = vunpack.c.l.b16 %v231
        %v258 = vunpack.c.h.b16 %v231
        %v259 = vunpack.c.l.b16 %v232
        %v260 = vunpack.c.h.b16 %v232
        %v261 = vunpack.c.l.b16 %v233
        %v262 = vunpack.c.h.b16 %v233
        %v263 = vunpack.c.l.b16 %v234
        %v264 = vunpack.c.h.b16 %v234
        %v265 = vunpack.c.l.b16 %v235
        %v266 = vunpack.c.h.b16 %v235
        %v267 = vpack.c.b16 %v259, %v257
        %v268 = vpack.c.b16 %v260, %v258
        %v269 = vpack.c.b16 %v263, %v261
        %v270 = vpack.c.b16 %v264, %v262
        %v271 = vpack.c.b16 %v265, %v265
        %v272 = vpack.c.b16 %v266, %v266
        %vm277 = vcmask 326656
        %v279 = vsel %vm277, %v250, 0
        %v282 = vsel %vm277, %v251, 0
        %vm284 = vcmask 1043456
        %v286 = vsel %vm284, %v271, 0
        %v289 = vsel %vm284, %v272, 0
        %291 = vmatpush.bf16.msra.mxu0 0
        %292 = vmatpush.bf16.msra.mxu0 0
        %293 = vmatpush.bf16.msra.mxu0 0
        %294 = vmatpush.bf16.msra.mxu0 0
        %295 = vmatpush.bf16.msra.mxu0 0
        %296 = vmatpush.bf16.msra.mxu0 %v286
        %297 = vmatpush.bf16.msra.mxu0 %v269
        %298 = vmatpush.bf16.msra.mxu0 %v267
        %299 = vmatmul.bf16.gmra.mxu0 %v279
        %v300 = vpop.f32.mrf.mxu0
        %v301 = vadd.f32 %v238, %v300
        %v302 = vpop.f32.mrf.mxu0
        %v303 = vadd.f32 %v238, %v302
        %304 = vmatmul.bf16.gmra.mxu0 %v282
        %v305 = vpop.f32.mrf.mxu0
        %v306 = vadd.f32 %v238, %v305
        %v307 = vpop.f32.mrf.mxu0
        %v308 = vadd.f32 %v238, %v307
        %309 = vdwg.mxu0
        %310 = vmatpush.bf16.msra.mxu0 0
        %311 = vmatpush.bf16.msra.mxu0 0
        %312 = vmatpush.bf16.msra.mxu0 0
        %313 = vmatpush.bf16.msra.mxu0 0
        %314 = vmatpush.bf16.msra.mxu0 0
        %315 = vmatpush.bf16.msra.mxu0 %v289
        %316 = vmatpush.bf16.msra.mxu0 %v270
        %317 = vmatpush.bf16.msra.mxu0 %v268
        %318 = vmatmul.bf16.gmra.mxu0 %v279
        %v319 = vpop.f32.mrf.mxu0
        %v320 = vadd.f32 %v239, %v319
        %v321 = vpop.f32.mrf.mxu0
        %v322 = vadd.f32 %v239, %v321
        %323 = vmatmul.bf16.gmra.mxu0 %v282
        %v324 = vpop.f32.mrf.mxu0
        %v325 = vadd.f32 %v239, %v324
        %v326 = vpop.f32.mrf.mxu0
        %v327 = vadd.f32 %v239, %v326
        %328 = vdwg.mxu0
        %v329 = vmax.f32 %v301, 0.0
        %v330 = vmax.f32 %v320, 0.0
        %v331 = vmax.f32 %v303, 0.0
        %v332 = vmax.f32 %v322, 0.0
        %v333 = vmax.f32 %v306, 0.0
        %v334 = vmax.f32 %v325, 0.0
        %v335 = vmax.f32 %v308, 0.0
        %v336 = vmax.f32 %v327, 0.0
        %v337 = vpack.c.bf16 %v331, %v329
        %v338 = vpack.c.bf16 %v332, %v330
        %v339 = vpack.c.bf16 %v335, %v333
        %v340 = vpack.c.bf16 %v336, %v334
        %v341 = vld [vmem:[%s3] sm:$0xf]
        %v342 = vld [vmem:[%s3 + $0x4] sm:$0xf]
        %v343 = vld [vmem:[%s3 + $0x8] sm:$0xf]
        %v344 = vld [vmem:[%s3 + $0xc] sm:$0xf]
        %v345 = vld [vmem:[%s3 + $0x10] sm:$0xf]
        %v346 = vld [vmem:[%s3 + $0x14] sm:$0xf]
        %v347 = vld [vmem:[%s3 + $0x18] sm:$0xf]
        %v348 = vld [vmem:[%s3 + $0x1c] sm:$0xf]
        %v349 = vld [vmem:[%s3 + $0x20] sm:$0xf]
        %v350 = vld [vmem:[%s3 + $0x24] sm:$0xf]
        %v351 = vld [vmem:[%s3 + $0x28] sm:$0xf]
        %v352 = vld [vmem:[%s3 + $0x2c] sm:$0xf]
        %v353 = vld [vmem:[%s3 + $0x30] sm:$0xf]
        %v354 = vld [vmem:[%s3 + $0x34] sm:$0xf]
        %v355 = vld [vmem:[%s3 + $0x38] sm:$0xf]
        %v356 = vld [vmem:[%s3 + $0x3c] sm:$0xf]
        %v357 = vld [vmem:[%s3 + $0x40] sm:$0xf]
        %v358 = vld [vmem:[%s3 + $0x44] sm:$0xf]
        %v359 = vld [vmem:[%s3 + $0x48] sm:$0xf]
        %v360 = vld [vmem:[%s3 + $0x4c] sm:$0xf]
        %v361 = vld [vmem:[%s3 + $0x50] sm:$0xf]
        %v362 = vld [vmem:[%s3 + $0x54] sm:$0xf]
        %v363 = vld [vmem:[%s3 + $0x58] sm:$0xf]
        %v364 = vld [vmem:[%s3 + $0x5c] sm:$0xf]
        %v365 = vld [vmem:[%s3 + $0x60] sm:$0xf]
        %v366 = vld [vmem:[%s3 + $0x64] sm:$0xf]
        %v367 = vld [vmem:[%s3 + $0x68] sm:$0xf]
        %v368 = vld [vmem:[%s3 + $0x6c] sm:$0xf]
        %v369 = vld [vmem:[%s3 + $0x70] sm:$0xf]
        %v370 = vld [vmem:[%s3 + $0x74] sm:$0xf]
        %v371 = vld [vmem:[%s3 + $0x78] sm:$0xf]
        %v372 = vld [vmem:[%s3 + $0x7c] sm:$0xf]
        %v373 = vld [vmem:[%s4] sm:$0x1]
        %v375 = vperm.slane %v373, 0
        %v409 = vunpack.c.l.b16 %v341
        %v410 = vunpack.c.l.b16 %v342
        %v411 = vunpack.c.l.b16 %v343
        %v412 = vunpack.c.l.b16 %v344
        %v413 = vunpack.c.l.b16 %v345
        %v414 = vunpack.c.l.b16 %v346
        %v415 = vunpack.c.l.b16 %v347
        %v416 = vunpack.c.l.b16 %v348
        %v417 = vunpack.c.l.b16 %v349
        %v418 = vunpack.c.l.b16 %v350
        %v419 = vunpack.c.l.b16 %v351
        %v420 = vunpack.c.l.b16 %v352
        %v421 = vunpack.c.l.b16 %v353
        %v422 = vunpack.c.l.b16 %v354
        %v423 = vunpack.c.l.b16 %v355
        %v424 = vunpack.c.l.b16 %v356
        %v425 = vunpack.c.l.b16 %v357
        %v426 = vunpack.c.l.b16 %v358
        %v427 = vunpack.c.l.b16 %v359
        %v428 = vunpack.c.l.b16 %v360
        %v429 = vunpack.c.l.b16 %v361
        %v430 = vunpack.c.l.b16 %v362
        %v431 = vunpack.c.l.b16 %v363
        %v432 = vunpack.c.l.b16 %v364
        %v433 = vunpack.c.l.b16 %v365
        %v434 = vunpack.c.l.b16 %v366
        %v435 = vunpack.c.l.b16 %v367
        %v436 = vunpack.c.l.b16 %v368
        %v437 = vunpack.c.l.b16 %v369
        %v438 = vunpack.c.l.b16 %v370
        %v439 = vunpack.c.l.b16 %v371
        %v440 = vunpack.c.l.b16 %v372
        %v441 = vpack.c.b16 %v410, %v409
        %v442 = vpack.c.b16 %v412, %v411
        %v443 = vpack.c.b16 %v414, %v413
        %v444 = vpack.c.b16 %v416, %v415
        %v445 = vpack.c.b16 %v418, %v417
        %v446 = vpack.c.b16 %v420, %v419
        %v447 = vpack.c.b16 %v422, %v421
        %v448 = vpack.c.b16 %v424, %v423
        %v449 = vpack.c.b16 %v426, %v425
        %v450 = vpack.c.b16 %v428, %v427
        %v451 = vpack.c.b16 %v430, %v429
        %v452 = vpack.c.b16 %v432, %v431
        %v453 = vpack.c.b16 %v434, %v433
        %v454 = vpack.c.b16 %v436, %v435
        %v455 = vpack.c.b16 %v438, %v437
        %v456 = vpack.c.b16 %v440, %v439
        %473 = vmatpush.bf16.msra.mxu0 %v448
        %474 = vmatpush.bf16.msra.mxu0 %v447
        %475 = vmatpush.bf16.msra.mxu0 %v446
        %476 = vmatpush.bf16.msra.mxu0 %v445
        %477 = vmatpush.bf16.msra.mxu0 %v444
        %478 = vmatpush.bf16.msra.mxu0 %v443
        %479 = vmatpush.bf16.msra.mxu0 %v442
        %480 = vmatpush.bf16.msra.mxu0 %v441
        %481 = vmatmul.bf16.gmra.mxu0 %v337
        %v482 = vpop.f32.mrf.mxu0
        %v483 = vadd.f32 %v375, %v482
        %v484 = vpop.f32.mrf.mxu0
        %v485 = vadd.f32 %v375, %v484
        %486 = vmatmul.bf16.gmra.mxu0 %v339
        %v487 = vpop.f32.mrf.mxu0
        %v488 = vadd.f32 %v375, %v487
        %v489 = vpop.f32.mrf.mxu0
        %v490 = vadd.f32 %v375, %v489
        %491 = vdwg.mxu0
        %492 = vmatpush.bf16.msra.mxu0 %v456
        %493 = vmatpush.bf16.msra.mxu0 %v455
        %494 = vmatpush.bf16.msra.mxu0 %v454
        %495 = vmatpush.bf16.msra.mxu0 %v453
        %496 = vmatpush.bf16.msra.mxu0 %v452
        %497 = vmatpush.bf16.msra.mxu0 %v451
        %498 = vmatpush.bf16.msra.mxu0 %v450
        %499 = vmatpush.bf16.msra.mxu0 %v449
        %500 = vmatmul.bf16.gmra.mxu0 %v338
        %v501 = vpop.f32.mrf.mxu0
        %v502 = vadd.f32 %v483, %v501
        %v503 = vpop.f32.mrf.mxu0
        %v504 = vadd.f32 %v485, %v503
        %505 = vmatmul.bf16.gmra.mxu0 %v340
        %v506 = vpop.f32.mrf.mxu0
        %v507 = vadd.f32 %v488, %v506
        %v508 = vpop.f32.mrf.mxu0
        %v509 = vadd.f32 %v490, %v508
        %510 = vdwg.mxu0
        %v511 = vmax.f32 %v502, 0.0
        %v512 = vmax.f32 %v504, 0.0
        %v513 = vmax.f32 %v507, 0.0
        %v514 = vmax.f32 %v509, 0.0
        %v515 = vpack.c.bf16 %v511, %v511
        %v516 = vpack.c.bf16 %v512, %v512
        %v517 = vpack.c.bf16 %v513, %v513
        %v518 = vpack.c.bf16 %v514, %v514
        %519 = vst [vmem:[%s218] sm:$0xf] %v515
        %520 = vst [vmem:[%s218 + $0x4] sm:$0xf] %v516
        %521 = vst [vmem:[%s218 + $0x8] sm:$0xf] %v517
        %522 = vst [vmem:[%s218 + $0xc] sm:$0xf] %v518
        %s523 = sand.u32 %s137, 1
        %s524 = scalar_lea.sflag [#allocation3], %s523
        %s525 = sand.u32 %s137, 1
        %s526 = smul.addr %s525, 16
        %s527 = scalar_lea.vmem [#allocation2], %s526
        // Predicated region
        $region41: #{_lambda_.1} parent=39 // pred_check
          %p528 = pneg %p147
        $region42: #{_lambda_.1} parent=39 // pred_check_branch
          %530 = sbr.rel (%p528) target = $region44
        $region43: #{_lambda_.1} parent=39 // pred_region
          %s531 = smul.u32 4, %s19
          %533 = vsyncadd %s524, 0
          %s534 = smul.addr %s531, 4
          %s535 = scalar_lea.hbm %s5, %s534
          %s536 = sshll.u32 %s527, 4
          %s537 = int_to_ptr.vmem [resolvable:$true] %s536
          %s538 = sshll.u32 %s535, 4
          %s539 = int_to_ptr.hbm [resolvable:$true] %s538
          %544 = dma.vmem_to_hbm [thread:$0]  %s537, 256, %s539, %s524, 64, 64, 4
        $region44: #{_lambda_.1} parent=39 // pred_fallthru
          _
      $region40: #{_lambda_.1} parent=5 // pred_fallthru
        _
      %p545 = scmp.le.s32.totalorder 2, %s14
      // Predicated region
      $region45: #{_lambda_.1} parent=5 // pred_check
        %p546 = pneg %p545
      $region46: #{_lambda_.1} parent=5 // pred_check_branch
        %548 = sbr.rel (%p546) target = $region48
      $region47: #{_lambda_.1} parent=5 // pred_region
        %s549 = ssub.s32 %s14, 2
        // Predicated region
        $region49: #{_lambda_.1} parent=47 // pred_check
          %p550 = pneg %p153
        $region50: #{_lambda_.1} parent=47 // pred_check_branch
          %552 = sbr.rel (%p550) target = $region52
        $region51: #{_lambda_.1} parent=47 // pred_region
          %s553 = sand.u32 %s138, 1
          %s554 = scalar_lea.sflag [#allocation3], %s553
          %s555 = sand.u32 %s138, 1
          %s556 = smul.addr %s555, 16
          %s557 = scalar_lea.vmem [#allocation2], %s556
          %559 = dma.done %s554, 256
        $region52: #{_lambda_.1} parent=47 // pred_fallthru
          _
      $region48: #{_lambda_.1} parent=5 // pred_fallthru
        _
    $region6: #{_lambda_.1} parent=1 // loop_footer
      %s18 = sadd.s32 1, %s14
    $region7: #{_lambda_.1} parent=1 // loop_footer_branch
      %13 = sbr.rel target = $region3
    $region8: #{_lambda_.1} parent=1 // loop_exit
      _
    %560 = vsyncpa [#allocation3], 1
    %s561 = scalar_lea.sflag [#allocation3], 1
    %562 = vsyncpa %s561, 1

</llo_original>
